<compile_context>
chip_gen: v6e
topology: v6e:2x2x1
jax: 0.10.0
libtpu: 0.0.40
codegen_flags: <defaults>
</compile_context>

<pallas_src>
import jax
import jax.numpy as jnp
from jax.experimental import pallas as pl
from jax.experimental.pallas import tpu as pltpu

NN_LAYER_1 = 400
NN_LAYER_2 = 300

_LANE = 128
_MIN_TILE_M = 16            # bf16 packs 2 rows per sublane -> native (16, 128) tile
_DEFAULT_BLOCK_M = 1024     # amortizes ~0.35 us/step grid overhead; ~8 MiB VMEM at this tile
_VMEM_LIMIT_BYTES = 32 * 1024 * 1024


def _round_up(n, m):
    return ((n + m - 1) // m) * m


def qnet_kernel(x_ref, w1_ref, b1_ref, w2_ref, b2_ref, w3_ref, b3_ref, o_ref):
    # x tile: (bm, obs) f32 straight from HBM; cast to bf16 in VMEM (fused pad/cast, K unpadded).
    x = x_ref[...].astype(jnp.bfloat16)

    h1 = jnp.dot(x, w1_ref[...], preferred_element_type=jnp.float32) + b1_ref[...]
    h1 = jnp.maximum(h1, 0.0).astype(jnp.bfloat16)   # f32 epilogue; bf16 only as next MXU operand

    h2 = jnp.dot(h1, w2_ref[...], preferred_element_type=jnp.float32) + b2_ref[...]
    h2 = jnp.maximum(h2, 0.0).astype(jnp.bfloat16)

    o_ref[...] = jnp.dot(h2, w3_ref[...], preferred_element_type=jnp.float32) + b3_ref[...]


def prepare_params(params):
    """Pad output feature dims to lane multiples of 128 (layer-1 K stays = obs_space),
    cast weights to bf16; biases stay f32."""
    w1, b1, w2, b2, w3, b3 = params
    obs, h1 = w1.shape
    h2 = w2.shape[1]
    act = w3.shape[1]
    h1_p = _round_up(h1, _LANE)
    h2_p = _round_up(h2, _LANE)
    act_p = _round_up(act, _LANE)

    def pad2(a, rows, cols):
        return jnp.pad(a, ((0, rows - a.shape[0]), (0, cols - a.shape[1])))

    w1p = pad2(w1, obs, h1_p).astype(jnp.bfloat16)    # K unpadded: no zero-FLOP inflation of fc1
    w2p = pad2(w2, h1_p, h2_p).astype(jnp.bfloat16)
    w3p = pad2(w3, h2_p, act_p).astype(jnp.bfloat16)
    b1p = pad2(b1, 1, h1_p).astype(jnp.float32)
    b2p = pad2(b2, 1, h2_p).astype(jnp.float32)
    b3p = pad2(b3, 1, act_p).astype(jnp.float32)
    return (w1p, b1p, w2p, b2p, w3p, b3p)


def _choose_batch_tile(batch, block_m):
    """Pick the batch tile: >=2 grid steps when there is enough work (so v7x uses both TCs),
    rounded to 16 rows, sized to minimize batch-padding waste."""
    min_steps = 2 if batch >= 2 * _MIN_TILE_M else 1
    steps = max(pl.cdiv(batch, block_m), min_steps)
    return _round_up(pl.cdiv(batch, steps), _MIN_TILE_M)


def qnetwork_dqn_forward(x, prepared_params, action_space, block_m=_DEFAULT_BLOCK_M):
    w1, b1, w2, b2, w3, b3 = prepared_params
    obs, h1_p = w1.shape
    h2_p = w2.shape[1]
    act_p = w3.shape[1]

    B = x.shape[0]
    bm = _choose_batch_tile(B, block_m)
    grid_m = pl.cdiv(B, bm)
    b_pad = grid_m * bm

    x_in = x.astype(jnp.float32)
    if b_pad != B:
        # Cheap batch-only pad (no feature pad, no dtype rewrite of the whole slab).
        x_in = jnp.pad(x_in, ((0, b_pad - B), (0, 0)))

    resident = lambda i: (0, 0)   # same block every grid step -> weights/biases stay in VMEM

    out = pl.pallas_call(
        qnet_kernel,
        out_shape=jax.ShapeDtypeStruct((b_pad, act_p), jnp.float32),
        grid_spec=pltpu.PrefetchScalarGridSpec(
            num_scalar_prefetch=0,
            grid=(grid_m,),
            in_specs=[
                pl.BlockSpec((bm, obs), lambda i: (i, 0)),
                pl.BlockSpec((obs, h1_p), resident),
                pl.BlockSpec((1, h1_p), resident),
                pl.BlockSpec((h1_p, h2_p), resident),
                pl.BlockSpec((1, h2_p), resident),
                pl.BlockSpec((h2_p, act_p), resident),
                pl.BlockSpec((1, act_p), resident),
            ],
            out_specs=pl.BlockSpec((bm, act_p), lambda i: (i, 0)),
        ),
        compiler_params=pltpu.CompilerParams(
            dimension_semantics=("parallel",),    # v7x: shard batch tiles over both TCs
            vmem_limit_bytes=_VMEM_LIMIT_BYTES,   # headroom for bm up to ~2048 on all gens
        ),
    )(x_in, w1, b1, w2, b2, w3, b3)

    # TODO(synk): consumers that only need argmax over Q-values could fuse the slice/argmax
    # into a follow-up kernel to avoid re-reading the lane-padded slab.
    return out[:B, :action_space]


def init_params(key, obs_space, action_space):
    """PyTorch nn.Linear default init: U(-1/sqrt(fan_in), +1/sqrt(fan_in))."""
    def linear_init(k, fan_in, fan_out):
        kw, kb = jax.random.split(k)
        bound = 1.0 / jnp.sqrt(jnp.float32(fan_in))
        # stored as [in, out] (transposed relative to PyTorch's [out, in])
        w = jax.random.uniform(kw, (fan_in, fan_out), jnp.float32, -bound, bound)
        b = jax.random.uniform(kb, (1, fan_out), jnp.float32, -bound, bound)
        return w, b

    k1, k2, k3 = jax.random.split(key, 3)
    w1, b1 = linear_init(k1, obs_space, NN_LAYER_1)
    w2, b2 = linear_init(k2, NN_LAYER_1, NN_LAYER_2)
    w3, b3 = linear_init(k3, NN_LAYER_2, action_space)
    return (w1, b1, w2, b2, w3, b3)


def reference_forward_f32(x, params):
    """Exact f32 PyTorch-equivalent forward (semantics check, loose tolerance vs bf16 kernel)."""
    w1, b1, w2, b2, w3, b3 = params
    h1 = jnp.maximum(x @ w1 + b1, 0.0)
    h2 = jnp.maximum(h1 @ w2 + b2, 0.0)
    return h2 @ w3 + b3


def reference_forward_bf16(x, prepared_params, action_space):
    """Numerics-matched reference: same bf16 operands / f32 accumulation as the kernel."""
    w1, b1, w2, b2, w3, b3 = prepared_params
    xb = x.astype(jnp.bfloat16)
    h1 = jnp.maximum(jnp.dot(xb, w1, preferred_element_type=jnp.float32) + b1, 0.0)
    h1 = h1.astype(jnp.bfloat16)
    h2 = jnp.maximum(jnp.dot(h1, w2, preferred_element_type=jnp.float32) + b2, 0.0)
    h2 = h2.astype(jnp.bfloat16)
    out = jnp.dot(h2, w3, preferred_element_type=jnp.float32) + b3
    return out[:, :action_space]


if __name__ == "__main__":
    key = jax.random.PRNGKey(0)
    k_params, k_x = jax.random.split(key)

    batch = 2
    obs_space = 32
    action_space = 8

    params = init_params(k_params, obs_space, action_space)
    prepared = prepare_params(params)
    x = jax.random.normal(k_x, (batch, obs_space), jnp.float32)

    out = qnetwork_dqn_forward(x, prepared, action_space)
    out = jax.block_until_ready(out)
    assert out.shape == (batch, action_space)

    # Tight check against a numerics-matched (bf16 operands, f32 accum) reference.
    ref_bf16 = reference_forward_bf16(x, prepared, action_space)
    assert jnp.allclose(out, ref_bf16, atol=1e-3, rtol=1e-3), "mismatch vs bf16-matched reference"

    # Loose check against the exact f32 PyTorch-equivalent forward (semantics preserved).
    ref_f32 = reference_forward_f32(x, params)
    assert jnp.allclose(out, ref_f32, atol=5e-2, rtol=5e-2), "mismatch vs f32 reference"

    print("KERNEL_OK")
</pallas_src>

<mosaic_0001>
module attributes {stable_mosaic.version = 11 : i64} {
  func.func @qnet_kernel(%arg0: i32, %arg1: memref<16x32xf32, #tpu.memory_space<vmem>>, %arg2: memref<32x512xbf16, #tpu.memory_space<vmem>>, %arg3: memref<1x512xf32, #tpu.memory_space<vmem>>, %arg4: memref<512x384xbf16, #tpu.memory_space<vmem>>, %arg5: memref<1x384xf32, #tpu.memory_space<vmem>>, %arg6: memref<384x128xbf16, #tpu.memory_space<vmem>>, %arg7: memref<1x128xf32, #tpu.memory_space<vmem>>, %arg8: memref<16x128xf32, #tpu.memory_space<vmem>>) attributes {dimension_semantics = [#tpu.dimension_semantics<parallel>], iteration_bounds = array<i64: 1>, scalar_prefetch = 0 : i64, scratch_operands = 0 : i64, tpu.core_type = #tpu.core_type<tc>, window_params = [{transform_indices = @transform_0, window_bounds = array<i64: 16, 32>}, {pipeline_mode = #tpu.pipeline_mode<synchronous>, transform_indices = @transform_1, window_bounds = array<i64: 32, 512>}, {pipeline_mode = #tpu.pipeline_mode<synchronous>, transform_indices = @transform_2, window_bounds = array<i64: 1, 512>}, {pipeline_mode = #tpu.pipeline_mode<synchronous>, transform_indices = @transform_3, window_bounds = array<i64: 512, 384>}, {pipeline_mode = #tpu.pipeline_mode<synchronous>, transform_indices = @transform_4, window_bounds = array<i64: 1, 384>}, {pipeline_mode = #tpu.pipeline_mode<synchronous>, transform_indices = @transform_5, window_bounds = array<i64: 384, 128>}, {pipeline_mode = #tpu.pipeline_mode<synchronous>, transform_indices = @transform_6, window_bounds = array<i64: 1, 128>}, {transform_indices = @transform_7, window_bounds = array<i64: 16, 128>}]} {
    %c0 = arith.constant 0 : index
    %c0_0 = arith.constant 0 : index
    %0 = vector.load %arg1[%c0, %c0_0] : memref<16x32xf32, #tpu.memory_space<vmem>>, vector<16x32xf32>
    %1 = arith.truncf %0 : vector<16x32xf32> to vector<16x32xbf16>
    %c0_1 = arith.constant 0 : index
    %c0_2 = arith.constant 0 : index
    %2 = vector.load %arg2[%c0_1, %c0_2] : memref<32x512xbf16, #tpu.memory_space<vmem>>, vector<32x512xbf16>
    %cst = arith.constant dense<0.000000e+00> : vector<16x512xf32>
    %3 = tpu.matmul %1, %2, %cst {dimension_numbers = #tpu.dot_dimension_numbers<[1], [0], [0], [1], [0, 0, 1, 1], [], []>} : vector<16x32xbf16>, vector<32x512xbf16>, vector<16x512xf32> -> vector<16x512xf32>
    %c0_3 = arith.constant 0 : index
    %c0_4 = arith.constant 0 : index
    %4 = vector.load %arg3[%c0_3, %c0_4] : memref<1x512xf32, #tpu.memory_space<vmem>>, vector<1x512xf32>
    %5 = vector.broadcast %4 : vector<1x512xf32> to vector<16x512xf32>
    %6 = arith.addf %3, %5 : vector<16x512xf32>
    %cst_5 = arith.constant 0.000000e+00 : f32
    %7 = vector.broadcast %cst_5 : f32 to vector<16x512xf32>
    %8 = arith.maximumf %6, %7 : vector<16x512xf32>
    %9 = arith.truncf %8 : vector<16x512xf32> to vector<16x512xbf16>
    %c0_6 = arith.constant 0 : index
    %c0_7 = arith.constant 0 : index
    %10 = vector.load %arg4[%c0_6, %c0_7] : memref<512x384xbf16, #tpu.memory_space<vmem>>, vector<512x384xbf16>
    %cst_8 = arith.constant dense<0.000000e+00> : vector<16x384xf32>
    %11 = tpu.matmul %9, %10, %cst_8 {dimension_numbers = #tpu.dot_dimension_numbers<[1], [0], [0], [1], [0, 0, 1, 1], [], []>} : vector<16x512xbf16>, vector<512x384xbf16>, vector<16x384xf32> -> vector<16x384xf32>
    %c0_9 = arith.constant 0 : index
    %c0_10 = arith.constant 0 : index
    %12 = vector.load %arg5[%c0_9, %c0_10] : memref<1x384xf32, #tpu.memory_space<vmem>>, vector<1x384xf32>
    %13 = vector.broadcast %12 : vector<1x384xf32> to vector<16x384xf32>
    %14 = arith.addf %11, %13 : vector<16x384xf32>
    %cst_11 = arith.constant 0.000000e+00 : f32
    %15 = vector.broadcast %cst_11 : f32 to vector<16x384xf32>
    %16 = arith.maximumf %14, %15 : vector<16x384xf32>
    %17 = arith.truncf %16 : vector<16x384xf32> to vector<16x384xbf16>
    %c0_12 = arith.constant 0 : index
    %c0_13 = arith.constant 0 : index
    %18 = vector.load %arg6[%c0_12, %c0_13] : memref<384x128xbf16, #tpu.memory_space<vmem>>, vector<384x128xbf16>
    %cst_14 = arith.constant dense<0.000000e+00> : vector<16x128xf32>
    %19 = tpu.matmul %17, %18, %cst_14 {dimension_numbers = #tpu.dot_dimension_numbers<[1], [0], [0], [1], [0, 0, 1, 1], [], []>} : vector<16x384xbf16>, vector<384x128xbf16>, vector<16x128xf32> -> vector<16x128xf32>
    %c0_15 = arith.constant 0 : index
    %c0_16 = arith.constant 0 : index
    %20 = vector.load %arg7[%c0_15, %c0_16] : memref<1x128xf32, #tpu.memory_space<vmem>>, vector<1x128xf32>
    %21 = vector.broadcast %20 : vector<1x128xf32> to vector<16x128xf32>
    %22 = arith.addf %19, %21 : vector<16x128xf32>
    %c0_17 = arith.constant 0 : index
    %c0_18 = arith.constant 0 : index
    %23 = vector.load %arg8[%c0_17, %c0_18] : memref<16x128xf32, #tpu.memory_space<vmem>>, vector<16x128xf32>
    tpu.vector_store %arg8[%c0_17, %c0_18], %22 {strides = array<i32>} : memref<16x128xf32, #tpu.memory_space<vmem>>, vector<16x128xf32>,
    return
  }
  func.func @transform_0(%arg0: i32) -> (i32, i32) {
    %c0_i32 = arith.constant 0 : i32
    %c0_i32_0 = arith.constant 0 : i32
    return %arg0, %c0_i32 : i32, i32
  }
  func.func @transform_1(%arg0: i32) -> (i32, i32) {
    %c0_i32 = arith.constant 0 : i32
    %c0_i32_0 = arith.constant 0 : i32
    %c0_i32_1 = arith.constant 0 : i32
    return %c0_i32, %c0_i32_0 : i32, i32
  }
  func.func @transform_2(%arg0: i32) -> (i32, i32) {
    %c0_i32 = arith.constant 0 : i32
    %c0_i32_0 = arith.constant 0 : i32
    %c0_i32_1 = arith.constant 0 : i32
    return %c0_i32, %c0_i32_0 : i32, i32
  }
  func.func @transform_3(%arg0: i32) -> (i32, i32) {
    %c0_i32 = arith.constant 0 : i32
    %c0_i32_0 = arith.constant 0 : i32
    %c0_i32_1 = arith.constant 0 : i32
    return %c0_i32, %c0_i32_0 : i32, i32
  }
  func.func @transform_4(%arg0: i32) -> (i32, i32) {
    %c0_i32 = arith.constant 0 : i32
    %c0_i32_0 = arith.constant 0 : i32
    %c0_i32_1 = arith.constant 0 : i32
    return %c0_i32, %c0_i32_0 : i32, i32
  }
  func.func @transform_5(%arg0: i32) -> (i32, i32) {
    %c0_i32 = arith.constant 0 : i32
    %c0_i32_0 = arith.constant 0 : i32
    %c0_i32_1 = arith.constant 0 : i32
    return %c0_i32, %c0_i32_0 : i32, i32
  }
  func.func @transform_6(%arg0: i32) -> (i32, i32) {
    %c0_i32 = arith.constant 0 : i32
    %c0_i32_0 = arith.constant 0 : i32
    %c0_i32_1 = arith.constant 0 : i32
    return %c0_i32, %c0_i32_0 : i32, i32
  }
  func.func @transform_7(%arg0: i32) -> (i32, i32) {
    %c0_i32 = arith.constant 0 : i32
    %c0_i32_0 = arith.constant 0 : i32
    return %arg0, %c0_i32 : i32, i32
  }
}

</mosaic_0001>

<llo_original>
// kernel: tpu_custom_call.1
$region0: #{tpu_custom_call.1}
  #allocation0 [shape = 'u32[]', space=smem, size = 0x4, offset = 0x4, fixed_abs, tag = 'smem constant byte address 0x4 - core index']
  #allocation1 [shape = 'u32[144,128]{1,0:T(1,128)}', space=vmem, size = 0x12000, scoped, tag = 'internal scratch']
  %s0 = inlined_call_operand.hbm [shape: f32[16,32], index: 0, kind: input, shape index: {}]
  %s1 = inlined_call_operand.hbm [shape: bf16[32,512], index: 1, kind: input, shape index: {}]
  %s2 = inlined_call_operand.hbm [shape: f32[1,512], index: 2, kind: input, shape index: {}]
  %s3 = inlined_call_operand.hbm [shape: bf16[512,384], index: 3, kind: input, shape index: {}]
  %s4 = inlined_call_operand.vmem [shape: f32[1,384], index: 4, kind: input, shape index: {}]
  %s5 = inlined_call_operand.hbm [shape: bf16[384,128], index: 5, kind: input, shape index: {}]
  %s6 = inlined_call_operand.vmem [shape: f32[1,128], index: 6, kind: input, shape index: {}]
  %s7 = inlined_call_operand.hbm [shape: f32[16,128], index: 7, kind: output, shape index: {}]
  %s8 = sld [smem:[#allocation0]]
  $region58: #{tpu_custom_call.1} parent=0
    _
  %s10 = ssub.s32 1, %s8
  %s11 = scalar_select 0, %s10, %s8
  $region1: #{tpu_custom_call.1} parent=0
    #allocation2 [shape = 'u8[8192]{0}', space=vmem, size = 0x2000, scoped, tag = 'input window, operand 0, single buffered']
    #allocation3 [shape = 's32[1]{0}', space=sflag, size = 0x4, scoped, tag = 'scoped memory for tpu_custom_call.1']
    #allocation4 [shape = 's32[1]{0}', space=sflag, size = 0x4, scoped, tag = 'scoped memory for tpu_custom_call.1']
    #allocation5 [shape = 'u8[32768]{0}', space=vmem, size = 0x8000, scoped, tag = 'input window, operand 1, single buffered']
    #allocation6 [shape = 's32[1]{0}', space=sflag, size = 0x4, scoped, tag = 'scoped memory for tpu_custom_call.1']
    #allocation7 [shape = 'u8[2048]{0}', space=vmem, size = 0x800, scoped, tag = 'input window, operand 2, single buffered']
    #allocation8 [shape = 'u8[393216]{0}', space=vmem, size = 0x60000, scoped, tag = 'input window, operand 3, single buffered']
    #allocation9 [shape = 's32[1]{0}', space=sflag, size = 0x4, scoped, tag = 'scoped memory for tpu_custom_call.1']
    #allocation10 [shape = 'u8[98304]{0}', space=vmem, size = 0x18000, scoped, tag = 'input window, operand 5, single buffered']
    #allocation11 [shape = 'u8[8192]{0}', space=vmem, size = 0x2000, scoped, tag = 'output window, operand 0, single buffered']
    %12 = vsyncpa [#allocation3], 0
    %13 = vsyncpa [#allocation6], 0
    %14 = vsyncpa [#allocation9], 0
    %15 = vsyncpa [#allocation4], 0
    // Predicated region
    $region2: #{tpu_custom_call.1} parent=1 // pred_check
      _
    $region3: #{tpu_custom_call.1} parent=1 // pred_check_branch
      %17 = sbr.rel (0) target = $region5
    $region4: #{tpu_custom_call.1} parent=1 // pred_region
      %s19 = ssub.s32 256, 256
      %20 = vsyncadd [#allocation3], %s19
      %s21 = sshll.u32 [#allocation2], 4
      %s22 = int_to_ptr.vmem [resolvable:$true] %s21
      %27 = dma.hbm_to_vmem [thread:$0]  %s0, 256, %s22, [#allocation3], 128, 128, 8
    $region5: #{tpu_custom_call.1} parent=1 // pred_fallthru
      _
    // Predicated region
    $region6: #{tpu_custom_call.1} parent=1 // pred_check
      _
    $region7: #{tpu_custom_call.1} parent=1 // pred_check_branch
      %29 = sbr.rel (0) target = $region9
    $region8: #{tpu_custom_call.1} parent=1 // pred_region
      %s31 = ssub.s32 1024, 1024
      %32 = vsyncadd [#allocation6], %s31
      %s33 = sshll.u32 [#allocation5], 4
      %s34 = int_to_ptr.vmem [resolvable:$true] %s33
      %39 = dma.hbm_to_vmem [thread:$0]  %s1, 1024, %s34, [#allocation6], 256, 256, 16
    $region9: #{tpu_custom_call.1} parent=1 // pred_fallthru
      _
    // Predicated region
    $region10: #{tpu_custom_call.1} parent=1 // pred_check
      _
    $region11: #{tpu_custom_call.1} parent=1 // pred_check_branch
      %41 = sbr.rel (0) target = $region13
    $region12: #{tpu_custom_call.1} parent=1 // pred_region
      %s43 = ssub.s32 64, 64
      %44 = vsyncadd [#allocation6], %s43
      %s46 = sshll.u32 [#allocation7], 4
      %s47 = int_to_ptr.vmem [resolvable:$true] %s46
      %49 = dma.hbm_to_vmem [thread:$0]  %s2, 64, %s47, [#allocation6]
    $region13: #{tpu_custom_call.1} parent=1 // pred_fallthru
      _
    // Predicated region
    $region14: #{tpu_custom_call.1} parent=1 // pred_check
      _
    $region15: #{tpu_custom_call.1} parent=1 // pred_check_branch
      %51 = sbr.rel (0) target = $region17
    $region16: #{tpu_custom_call.1} parent=1 // pred_region
      %s53 = ssub.s32 12288, 12288
      %54 = vsyncadd [#allocation9], %s53
      %s55 = sshll.u32 [#allocation8], 4
      %s56 = int_to_ptr.vmem [resolvable:$true] %s55
      %61 = dma.hbm_to_vmem [thread:$0]  %s3, 12288, %s56, [#allocation9], 192, 192, 12
    $region17: #{tpu_custom_call.1} parent=1 // pred_fallthru
      _
    // Predicated region
    $region18: #{tpu_custom_call.1} parent=1 // pred_check
      _
    $region19: #{tpu_custom_call.1} parent=1 // pred_check_branch
      %63 = sbr.rel (0) target = $region21
    $region20: #{tpu_custom_call.1} parent=1 // pred_region
      _
    $region21: #{tpu_custom_call.1} parent=1 // pred_fallthru
      _
    // Predicated region
    $region22: #{tpu_custom_call.1} parent=1 // pred_check
      _
    $region23: #{tpu_custom_call.1} parent=1 // pred_check_branch
      %65 = sbr.rel (0) target = $region25
    $region24: #{tpu_custom_call.1} parent=1 // pred_region
      %s67 = ssub.s32 3072, 3072
      %68 = vsyncadd [#allocation9], %s67
      %s69 = sshll.u32 [#allocation10], 4
      %s70 = int_to_ptr.vmem [resolvable:$true] %s69
      %75 = dma.hbm_to_vmem [thread:$0]  %s5, 3072, %s70, [#allocation9], 64, 64, 4
    $region25: #{tpu_custom_call.1} parent=1 // pred_fallthru
      _
    // Predicated region
    $region26: #{tpu_custom_call.1} parent=1 // pred_check
      _
    $region27: #{tpu_custom_call.1} parent=1 // pred_check_branch
      %77 = sbr.rel (0) target = $region29
    $region28: #{tpu_custom_call.1} parent=1 // pred_region
      _
    $region29: #{tpu_custom_call.1} parent=1 // pred_fallthru
      _
    // Predicated region
    $region30: #{tpu_custom_call.1} parent=1 // pred_check
      _
    $region31: #{tpu_custom_call.1} parent=1 // pred_check_branch
      %79 = sbr.rel (0) target = $region33
    $region32: #{tpu_custom_call.1} parent=1 // pred_region
      %80 = dma.done [#allocation3], 256
    $region33: #{tpu_custom_call.1} parent=1 // pred_fallthru
      _
    // Predicated region
    $region34: #{tpu_custom_call.1} parent=1 // pred_check
      _
    $region35: #{tpu_custom_call.1} parent=1 // pred_check_branch
      %82 = sbr.rel (0) target = $region37
    $region36: #{tpu_custom_call.1} parent=1 // pred_region
      %83 = dma.done [#allocation6], 1024
    $region37: #{tpu_custom_call.1} parent=1 // pred_fallthru
      _
    // Predicated region
    $region38: #{tpu_custom_call.1} parent=1 // pred_check
      _
    $region39: #{tpu_custom_call.1} parent=1 // pred_check_branch
      %85 = sbr.rel (0) target = $region41
    $region40: #{tpu_custom_call.1} parent=1 // pred_region
      %86 = dma.done [#allocation6], 64
    $region41: #{tpu_custom_call.1} parent=1 // pred_fallthru
      _
    // Predicated region
    $region42: #{tpu_custom_call.1} parent=1 // pred_check
      _
    $region43: #{tpu_custom_call.1} parent=1 // pred_check_branch
      %88 = sbr.rel (0) target = $region45
    $region44: #{tpu_custom_call.1} parent=1 // pred_region
      %89 = dma.done [#allocation9], 12288
    $region45: #{tpu_custom_call.1} parent=1 // pred_fallthru
      _
    // Predicated region
    $region46: #{tpu_custom_call.1} parent=1 // pred_check
      _
    $region47: #{tpu_custom_call.1} parent=1 // pred_check_branch
      %91 = sbr.rel (0) target = $region49
    $region48: #{tpu_custom_call.1} parent=1 // pred_region
      %92 = dma.done [#allocation9], 3072
    $region49: #{tpu_custom_call.1} parent=1 // pred_fallthru
      _
    %v94 = vld [vmem:[#allocation2] sm:$0xff]
    %v95 = vld [vmem:[#allocation2 + $0x8] sm:$0xff]
    %v96 = vpack.c.bf16 %v95, %v94
    %v97 = vld [vmem:[#allocation5] sm:$0xff]
    %v98 = vld [vmem:[#allocation5 + $0x8] sm:$0xff]
    %v99 = vld [vmem:[#allocation5 + $0x10] sm:$0xff]
    %v100 = vld [vmem:[#allocation5 + $0x18] sm:$0xff]
    %v101 = vld [vmem:[#allocation5 + $0x20] sm:$0xff]
    %v102 = vld [vmem:[#allocation5 + $0x28] sm:$0xff]
    %v103 = vld [vmem:[#allocation5 + $0x30] sm:$0xff]
    %v104 = vld [vmem:[#allocation5 + $0x38] sm:$0xff]
    %v105 = vld [vmem:[#allocation7] sm:$0xf]
    %v107 = vlaneseq
    %v108 = vshrl.u32 %v107, 7
    %v109 = vsub.s32 0, %v108
    %v110 = vrot.slane %v105, %v109
    %v111 = vlaneseq
    %v112 = vshrl.u32 %v111, 7
    %v113 = vsub.s32 1, %v112
    %v114 = vrot.slane %v105, %v113
    %v115 = vlaneseq
    %v116 = vshrl.u32 %v115, 7
    %v117 = vsub.s32 2, %v116
    %v118 = vrot.slane %v105, %v117
    %v119 = vlaneseq
    %v120 = vshrl.u32 %v119, 7
    %v121 = vsub.s32 3, %v120
    %v122 = vrot.slane %v105, %v121
    %v135 = vunpack.c.l.b16 %v97
    %v136 = vunpack.c.h.b16 %v97
    %v137 = vunpack.c.l.b16 %v98
    %v138 = vunpack.c.h.b16 %v98
    %v139 = vunpack.c.l.b16 %v99
    %v140 = vunpack.c.h.b16 %v99
    %v141 = vunpack.c.l.b16 %v100
    %v142 = vunpack.c.h.b16 %v100
    %v143 = vunpack.c.l.b16 %v101
    %v144 = vunpack.c.h.b16 %v101
    %v145 = vunpack.c.l.b16 %v102
    %v146 = vunpack.c.h.b16 %v102
    %v147 = vunpack.c.l.b16 %v103
    %v148 = vunpack.c.h.b16 %v103
    %v149 = vunpack.c.l.b16 %v104
    %v150 = vunpack.c.h.b16 %v104
    %v151 = vpack.c.b16 %v139, %v135
    %v152 = vpack.c.b16 %v140, %v136
    %v153 = vpack.c.b16 %v141, %v137
    %v154 = vpack.c.b16 %v142, %v138
    %v155 = vpack.c.b16 %v147, %v143
    %v156 = vpack.c.b16 %v148, %v144
    %v157 = vpack.c.b16 %v149, %v145
    %v158 = vpack.c.b16 %v150, %v146
    %vm167 = vcmask 261120
    %v169 = vsel %vm167, %v96, 0
    %171 = vmatprep.subr.bf16.mxu0 0
    %172 = vmatpush1.bf16.msra.mxu0 0
    %173 = vmatprep.subr.bf16.mxu0 0
    %174 = vmatpush1.bf16.msra.mxu0 0
    %175 = vmatprep.subr.bf16.mxu0 0
    %176 = vmatpush1.bf16.msra.mxu0 0
    %177 = vmatprep.subr.bf16.mxu0 0
    %178 = vmatpush1.bf16.msra.mxu0 0
    %179 = vmatprep.subr.bf16.mxu0 0
    %180 = vmatpush1.bf16.msra.mxu0 0
    %181 = vmatprep.subr.bf16.mxu0 0
    %182 = vmatpush1.bf16.msra.mxu0 0
    %183 = vmatprep.subr.bf16.mxu0 %v156
    %184 = vmatpush1.bf16.msra.mxu0 %v155
    %185 = vmatprep.subr.bf16.mxu0 %v152
    %186 = vmatpush1.bf16.msra.mxu0 %v151
    %187 = vmatprep.subr.bf16.mxu0 0
    %188 = vmatpush2.bf16.msra.mxu0 0
    %189 = vmatprep.subr.bf16.mxu0 0
    %190 = vmatpush2.bf16.msra.mxu0 0
    %191 = vmatprep.subr.bf16.mxu0 0
    %192 = vmatpush2.bf16.msra.mxu0 0
    %193 = vmatprep.subr.bf16.mxu0 0
    %194 = vmatpush2.bf16.msra.mxu0 0
    %195 = vmatprep.subr.bf16.mxu0 0
    %196 = vmatpush2.bf16.msra.mxu0 0
    %197 = vmatprep.subr.bf16.mxu0 0
    %198 = vmatpush2.bf16.msra.mxu0 0
    %199 = vmatprep.subr.bf16.mxu0 0
    %200 = vmatpush2.bf16.msra.mxu0 0
    %201 = vmatprep.subr.bf16.mxu0 0
    %202 = vmatpush2.bf16.msra.mxu0 0
    %203 = vmatprep.mubr.bf16.mxu0 0
    %204 = vmatmul.mubr.bf16.gmra.mxu0 %v169
    %v205 = vpop.f32.mrf.mxu0
    %v206 = vadd.f32 %v110, %v205
    %v207 = vpop.f32.mrf.mxu0
    %v208 = vadd.f32 %v114, %v207
    %v209 = vpop.f32.mrf.mxu0
    %v210 = vadd.f32 %v110, %v209
    %v211 = vpop.f32.mrf.mxu0
    %v212 = vadd.f32 %v114, %v211
    %213 = vdwg.mxu0
    %214 = vmatprep.subr.bf16.mxu0 0
    %215 = vmatpush1.bf16.msra.mxu0 0
    %216 = vmatprep.subr.bf16.mxu0 0
    %217 = vmatpush1.bf16.msra.mxu0 0
    %218 = vmatprep.subr.bf16.mxu0 0
    %219 = vmatpush1.bf16.msra.mxu0 0
    %220 = vmatprep.subr.bf16.mxu0 0
    %221 = vmatpush1.bf16.msra.mxu0 0
    %222 = vmatprep.subr.bf16.mxu0 0
    %223 = vmatpush1.bf16.msra.mxu0 0
    %224 = vmatprep.subr.bf16.mxu0 0
    %225 = vmatpush1.bf16.msra.mxu0 0
    %226 = vmatprep.subr.bf16.mxu0 %v158
    %227 = vmatpush1.bf16.msra.mxu0 %v157
    %228 = vmatprep.subr.bf16.mxu0 %v154
    %229 = vmatpush1.bf16.msra.mxu0 %v153
    %230 = vmatprep.subr.bf16.mxu0 0
    %231 = vmatpush2.bf16.msra.mxu0 0
    %232 = vmatprep.subr.bf16.mxu0 0
    %233 = vmatpush2.bf16.msra.mxu0 0
    %234 = vmatprep.subr.bf16.mxu0 0
    %235 = vmatpush2.bf16.msra.mxu0 0
    %236 = vmatprep.subr.bf16.mxu0 0
    %237 = vmatpush2.bf16.msra.mxu0 0
    %238 = vmatprep.subr.bf16.mxu0 0
    %239 = vmatpush2.bf16.msra.mxu0 0
    %240 = vmatprep.subr.bf16.mxu0 0
    %241 = vmatpush2.bf16.msra.mxu0 0
    %242 = vmatprep.subr.bf16.mxu0 0
    %243 = vmatpush2.bf16.msra.mxu0 0
    %244 = vmatprep.subr.bf16.mxu0 0
    %245 = vmatpush2.bf16.msra.mxu0 0
    %246 = vmatprep.mubr.bf16.mxu0 0
    %247 = vmatmul.mubr.bf16.gmra.mxu0 %v169
    %v248 = vpop.f32.mrf.mxu0
    %v249 = vadd.f32 %v118, %v248
    %v250 = vpop.f32.mrf.mxu0
    %v251 = vadd.f32 %v122, %v250
    %v252 = vpop.f32.mrf.mxu0
    %v253 = vadd.f32 %v118, %v252
    %v254 = vpop.f32.mrf.mxu0
    %v255 = vadd.f32 %v122, %v254
    %256 = vdwg.mxu0
    %v257 = vmax.f32 %v206, 0.0
    %v258 = vmax.f32 %v208, 0.0
    %v259 = vmax.f32 %v249, 0.0
    %v260 = vmax.f32 %v251, 0.0
    %v261 = vmax.f32 %v210, 0.0
    %v262 = vmax.f32 %v212, 0.0
    %v263 = vmax.f32 %v253, 0.0
    %v264 = vmax.f32 %v255, 0.0
    %v265 = vpack.c.bf16 %v261, %v257
    %v266 = vpack.c.bf16 %v262, %v258
    %v267 = vpack.c.bf16 %v263, %v259
    %v268 = vpack.c.bf16 %v264, %v260
    %v269 = vld [vmem:[#allocation8] sm:$0xff]
    %v270 = vld [vmem:[#allocation8 + $0x8] sm:$0xf]
    %v271 = vld [vmem:[#allocation8 + $0xc] sm:$0xff]
    %v272 = vld [vmem:[#allocation8 + $0x14] sm:$0xf]
    %v273 = vld [vmem:[#allocation8 + $0x18] sm:$0xff]
    %v274 = vld [vmem:[#allocation8 + $0x20] sm:$0xf]
    %v275 = vld [vmem:[#allocation8 + $0x24] sm:$0xff]
    %v276 = vld [vmem:[#allocation8 + $0x2c] sm:$0xf]
    %v277 = vld [vmem:[#allocation8 + $0x30] sm:$0xff]
    %v278 = vld [vmem:[#allocation8 + $0x38] sm:$0xf]
    %v279 = vld [vmem:[#allocation8 + $0x3c] sm:$0xff]
    %v280 = vld [vmem:[#allocation8 + $0x44] sm:$0xf]
    %v281 = vld [vmem:[#allocation8 + $0x48] sm:$0xff]
    %v282 = vld [vmem:[#allocation8 + $0x50] sm:$0xf]
    %v283 = vld [vmem:[#allocation8 + $0x54] sm:$0xff]
    %v284 = vld [vmem:[#allocation8 + $0x5c] sm:$0xf]
    %v285 = vld [vmem:[#allocation8 + $0x60] sm:$0xff]
    %v286 = vld [vmem:[#allocation8 + $0x68] sm:$0xf]
    %v287 = vld [vmem:[#allocation8 + $0x6c] sm:$0xff]
    %v288 = vld [vmem:[#allocation8 + $0x74] sm:$0xf]
    %v289 = vld [vmem:[#allocation8 + $0x78] sm:$0xff]
    %v290 = vld [vmem:[#allocation8 + $0x80] sm:$0xf]
    %v291 = vld [vmem:[#allocation8 + $0x84] sm:$0xff]
    %v292 = vld [vmem:[#allocation8 + $0x8c] sm:$0xf]
    %v293 = vld [vmem:[#allocation8 + $0x90] sm:$0xff]
    %v294 = vld [vmem:[#allocation8 + $0x98] sm:$0xf]
    %v295 = vld [vmem:[#allocation8 + $0x9c] sm:$0xff]
    %v296 = vld [vmem:[#allocation8 + $0xa4] sm:$0xf]
    %v297 = vld [vmem:[#allocation8 + $0xa8] sm:$0xff]
    %v298 = vld [vmem:[#allocation8 + $0xb0] sm:$0xf]
    %v299 = vld [vmem:[#allocation8 + $0xb4] sm:$0xff]
    %v300 = vld [vmem:[#allocation8 + $0xbc] sm:$0xf]
    %v301 = vld [vmem:[#allocation8 + $0xc0] sm:$0xff]
    %v302 = vld [vmem:[#allocation8 + $0xc8] sm:$0xf]
    %v303 = vld [vmem:[#allocation8 + $0xcc] sm:$0xff]
    %v304 = vld [vmem:[#allocation8 + $0xd4] sm:$0xf]
    %v305 = vld [vmem:[#allocation8 + $0xd8] sm:$0xff]
    %v306 = vld [vmem:[#allocation8 + $0xe0] sm:$0xf]
    %v307 = vld [vmem:[#allocation8 + $0xe4] sm:$0xff]
    %v308 = vld [vmem:[#allocation8 + $0xec] sm:$0xf]
    %v309 = vld [vmem:[#allocation8 + $0xf0] sm:$0xff]
    %v310 = vld [vmem:[#allocation8 + $0xf8] sm:$0xf]
    %v311 = vld [vmem:[#allocation8 + $0xfc] sm:$0xff]
    %v312 = vld [vmem:[#allocation8 + $0x104] sm:$0xf]
    %v313 = vld [vmem:[#allocation8 + $0x108] sm:$0xff]
    %v314 = vld [vmem:[#allocation8 + $0x110] sm:$0xf]
    %v315 = vld [vmem:[#allocation8 + $0x114] sm:$0xff]
    %v316 = vld [vmem:[#allocation8 + $0x11c] sm:$0xf]
    %v317 = vld [vmem:[#allocation8 + $0x120] sm:$0xff]
    %v318 = vld [vmem:[#allocation8 + $0x128] sm:$0xf]
    %v319 = vld [vmem:[#allocation8 + $0x12c] sm:$0xff]
    %v320 = vld [vmem:[#allocation8 + $0x134] sm:$0xf]
    %v321 = vld [vmem:[#allocation8 + $0x138] sm:$0xff]
    %v322 = vld [vmem:[#allocation8 + $0x140] sm:$0xf]
    %v323 = vld [vmem:[#allocation8 + $0x144] sm:$0xff]
    %v324 = vld [vmem:[#allocation8 + $0x14c] sm:$0xf]
    %v325 = vld [vmem:[#allocation8 + $0x150] sm:$0xff]
    %v326 = vld [vmem:[#allocation8 + $0x158] sm:$0xf]
    %v327 = vld [vmem:[#allocation8 + $0x15c] sm:$0xff]
    %v328 = vld [vmem:[#allocation8 + $0x164] sm:$0xf]
    %v329 = vld [vmem:[#allocation8 + $0x168] sm:$0xff]
    %v330 = vld [vmem:[#allocation8 + $0x170] sm:$0xf]
    %v331 = vld [vmem:[#allocation8 + $0x174] sm:$0xff]
    %v332 = vld [vmem:[#allocation8 + $0x17c] sm:$0xf]
    %v333 = vld [vmem:[#allocation8 + $0x180] sm:$0xff]
    %v334 = vld [vmem:[#allocation8 + $0x188] sm:$0xf]
    %v335 = vld [vmem:[#allocation8 + $0x18c] sm:$0xff]
    %v336 = vld [vmem:[#allocation8 + $0x194] sm:$0xf]
    %v337 = vld [vmem:[#allocation8 + $0x198] sm:$0xff]
    %v338 = vld [vmem:[#allocation8 + $0x1a0] sm:$0xf]
    %v339 = vld [vmem:[#allocation8 + $0x1a4] sm:$0xff]
    %v340 = vld [vmem:[#allocation8 + $0x1ac] sm:$0xf]
    %v341 = vld [vmem:[#allocation8 + $0x1b0] sm:$0xff]
    %v342 = vld [vmem:[#allocation8 + $0x1b8] sm:$0xf]
    %v343 = vld [vmem:[#allocation8 + $0x1bc] sm:$0xff]
    %v344 = vld [vmem:[#allocation8 + $0x1c4] sm:$0xf]
    %v345 = vld [vmem:[#allocation8 + $0x1c8] sm:$0xff]
    %v346 = vld [vmem:[#allocation8 + $0x1d0] sm:$0xf]
    %v347 = vld [vmem:[#allocation8 + $0x1d4] sm:$0xff]
    %v348 = vld [vmem:[#allocation8 + $0x1dc] sm:$0xf]
    %v349 = vld [vmem:[#allocation8 + $0x1e0] sm:$0xff]
    %v350 = vld [vmem:[#allocation8 + $0x1e8] sm:$0xf]
    %v351 = vld [vmem:[#allocation8 + $0x1ec] sm:$0xff]
    %v352 = vld [vmem:[#allocation8 + $0x1f4] sm:$0xf]
    %v353 = vld [vmem:[#allocation8 + $0x1f8] sm:$0xff]
    %v354 = vld [vmem:[#allocation8 + $0x200] sm:$0xf]
    %v355 = vld [vmem:[#allocation8 + $0x204] sm:$0xff]
    %v356 = vld [vmem:[#allocation8 + $0x20c] sm:$0xf]
    %v357 = vld [vmem:[#allocation8 + $0x210] sm:$0xff]
    %v358 = vld [vmem:[#allocation8 + $0x218] sm:$0xf]
    %v359 = vld [vmem:[#allocation8 + $0x21c] sm:$0xff]
    %v360 = vld [vmem:[#allocation8 + $0x224] sm:$0xf]
    %v361 = vld [vmem:[#allocation8 + $0x228] sm:$0xff]
    %v362 = vld [vmem:[#allocation8 + $0x230] sm:$0xf]
    %v363 = vld [vmem:[#allocation8 + $0x234] sm:$0xff]
    %v364 = vld [vmem:[#allocation8 + $0x23c] sm:$0xf]
    %v365 = vld [vmem:[#allocation8 + $0x240] sm:$0xff]
    %v366 = vld [vmem:[#allocation8 + $0x248] sm:$0xf]
    %v367 = vld [vmem:[#allocation8 + $0x24c] sm:$0xff]
    %v368 = vld [vmem:[#allocation8 + $0x254] sm:$0xf]
    %v369 = vld [vmem:[#allocation8 + $0x258] sm:$0xff]
    %v370 = vld [vmem:[#allocation8 + $0x260] sm:$0xf]
    %v371 = vld [vmem:[#allocation8 + $0x264] sm:$0xff]
    %v372 = vld [vmem:[#allocation8 + $0x26c] sm:$0xf]
    %v373 = vld [vmem:[#allocation8 + $0x270] sm:$0xff]
    %v374 = vld [vmem:[#allocation8 + $0x278] sm:$0xf]
    %v375 = vld [vmem:[#allocation8 + $0x27c] sm:$0xff]
    %v376 = vld [vmem:[#allocation8 + $0x284] sm:$0xf]
    %v377 = vld [vmem:[#allocation8 + $0x288] sm:$0xff]
    %v378 = vld [vmem:[#allocation8 + $0x290] sm:$0xf]
    %v379 = vld [vmem:[#allocation8 + $0x294] sm:$0xff]
    %v380 = vld [vmem:[#allocation8 + $0x29c] sm:$0xf]
    %v381 = vld [vmem:[#allocation8 + $0x2a0] sm:$0xff]
    %v382 = vld [vmem:[#allocation8 + $0x2a8] sm:$0xf]
    %v383 = vld [vmem:[#allocation8 + $0x2ac] sm:$0xff]
    %v384 = vld [vmem:[#allocation8 + $0x2b4] sm:$0xf]
    %v385 = vld [vmem:[#allocation8 + $0x2b8] sm:$0xff]
    %v386 = vld [vmem:[#allocation8 + $0x2c0] sm:$0xf]
    %v387 = vld [vmem:[#allocation8 + $0x2c4] sm:$0xff]
    %v388 = vld [vmem:[#allocation8 + $0x2cc] sm:$0xf]
    %v389 = vld [vmem:[#allocation8 + $0x2d0] sm:$0xff]
    %v390 = vld [vmem:[#allocation8 + $0x2d8] sm:$0xf]
    %v391 = vld [vmem:[#allocation8 + $0x2dc] sm:$0xff]
    %v392 = vld [vmem:[#allocation8 + $0x2e4] sm:$0xf]
    %v393 = vld [vmem:[#allocation8 + $0x2e8] sm:$0xff]
    %v394 = vld [vmem:[#allocation8 + $0x2f0] sm:$0xf]
    %v395 = vld [vmem:[#allocation8 + $0x2f4] sm:$0xff]
    %v396 = vld [vmem:[#allocation8 + $0x2fc] sm:$0xf]
    %v397 = vld [vmem:[%s4] sm:$0x7]
    %v399 = vlaneseq
    %v400 = vshrl.u32 %v399, 7
    %v401 = vsub.s32 0, %v400
    %v402 = vrot.slane %v397, %v401
    %v403 = vlaneseq
    %v404 = vshrl.u32 %v403, 7
    %v405 = vsub.s32 1, %v404
    %v406 = vrot.slane %v397, %v405
    %v407 = vlaneseq
    %v408 = vshrl.u32 %v407, 7
    %v409 = vsub.s32 2, %v408
    %v410 = vrot.slane %v397, %v409
    %v542 = vunpack.c.l.b16 %v269
    %v543 = vunpack.c.h.b16 %v269
    %v544 = vunpack.c.l.b16 %v270
    %v545 = vunpack.c.l.b16 %v271
    %v546 = vunpack.c.h.b16 %v271
    %v547 = vunpack.c.l.b16 %v272
    %v548 = vunpack.c.l.b16 %v273
    %v549 = vunpack.c.h.b16 %v273
    %v550 = vunpack.c.l.b16 %v274
    %v551 = vunpack.c.l.b16 %v275
    %v552 = vunpack.c.h.b16 %v275
    %v553 = vunpack.c.l.b16 %v276
    %v554 = vunpack.c.l.b16 %v277
    %v555 = vunpack.c.h.b16 %v277
    %v556 = vunpack.c.l.b16 %v278
    %v557 = vunpack.c.l.b16 %v279
    %v558 = vunpack.c.h.b16 %v279
    %v559 = vunpack.c.l.b16 %v280
    %v560 = vunpack.c.l.b16 %v281
    %v561 = vunpack.c.h.b16 %v281
    %v562 = vunpack.c.l.b16 %v282
    %v563 = vunpack.c.l.b16 %v283
    %v564 = vunpack.c.h.b16 %v283
    %v565 = vunpack.c.l.b16 %v284
    %v566 = vunpack.c.l.b16 %v285
    %v567 = vunpack.c.h.b16 %v285
    %v568 = vunpack.c.l.b16 %v286
    %v569 = vunpack.c.l.b16 %v287
    %v570 = vunpack.c.h.b16 %v287
    %v571 = vunpack.c.l.b16 %v288
    %v572 = vunpack.c.l.b16 %v289
    %v573 = vunpack.c.h.b16 %v289
    %v574 = vunpack.c.l.b16 %v290
    %v575 = vunpack.c.l.b16 %v291
    %v576 = vunpack.c.h.b16 %v291
    %v577 = vunpack.c.l.b16 %v292
    %v578 = vunpack.c.l.b16 %v293
    %v579 = vunpack.c.h.b16 %v293
    %v580 = vunpack.c.l.b16 %v294
    %v581 = vunpack.c.l.b16 %v295
    %v582 = vunpack.c.h.b16 %v295
    %v583 = vunpack.c.l.b16 %v296
    %v584 = vunpack.c.l.b16 %v297
    %v585 = vunpack.c.h.b16 %v297
    %v586 = vunpack.c.l.b16 %v298
    %v587 = vunpack.c.l.b16 %v299
    %v588 = vunpack.c.h.b16 %v299
    %v589 = vunpack.c.l.b16 %v300
    %v590 = vunpack.c.l.b16 %v301
    %v591 = vunpack.c.h.b16 %v301
    %v592 = vunpack.c.l.b16 %v302
    %v593 = vunpack.c.l.b16 %v303
    %v594 = vunpack.c.h.b16 %v303
    %v595 = vunpack.c.l.b16 %v304
    %v596 = vunpack.c.l.b16 %v305
    %v597 = vunpack.c.h.b16 %v305
    %v598 = vunpack.c.l.b16 %v306
    %v599 = vunpack.c.l.b16 %v307
    %v600 = vunpack.c.h.b16 %v307
    %v601 = vunpack.c.l.b16 %v308
    %v602 = vunpack.c.l.b16 %v309
    %v603 = vunpack.c.h.b16 %v309
    %v604 = vunpack.c.l.b16 %v310
    %v605 = vunpack.c.l.b16 %v311
    %v606 = vunpack.c.h.b16 %v311
    %v607 = vunpack.c.l.b16 %v312
    %v608 = vunpack.c.l.b16 %v313
    %v609 = vunpack.c.h.b16 %v313
    %v610 = vunpack.c.l.b16 %v314
    %v611 = vunpack.c.l.b16 %v315
    %v612 = vunpack.c.h.b16 %v315
    %v613 = vunpack.c.l.b16 %v316
    %v614 = vunpack.c.l.b16 %v317
    %v615 = vunpack.c.h.b16 %v317
    %v616 = vunpack.c.l.b16 %v318
    %v617 = vunpack.c.l.b16 %v319
    %v618 = vunpack.c.h.b16 %v319
    %v619 = vunpack.c.l.b16 %v320
    %v620 = vunpack.c.l.b16 %v321
    %v621 = vunpack.c.h.b16 %v321
    %v622 = vunpack.c.l.b16 %v322
    %v623 = vunpack.c.l.b16 %v323
    %v624 = vunpack.c.h.b16 %v323
    %v625 = vunpack.c.l.b16 %v324
    %v626 = vunpack.c.l.b16 %v325
    %v627 = vunpack.c.h.b16 %v325
    %v628 = vunpack.c.l.b16 %v326
    %v629 = vunpack.c.l.b16 %v327
    %v630 = vunpack.c.h.b16 %v327
    %v631 = vunpack.c.l.b16 %v328
    %v632 = vunpack.c.l.b16 %v329
    %v633 = vunpack.c.h.b16 %v329
    %v634 = vunpack.c.l.b16 %v330
    %v635 = vunpack.c.l.b16 %v331
    %v636 = vunpack.c.h.b16 %v331
    %v637 = vunpack.c.l.b16 %v332
    %v638 = vunpack.c.l.b16 %v333
    %v639 = vunpack.c.h.b16 %v333
    %v640 = vunpack.c.l.b16 %v334
    %v641 = vunpack.c.l.b16 %v335
    %v642 = vunpack.c.h.b16 %v335
    %v643 = vunpack.c.l.b16 %v336
    %v644 = vunpack.c.l.b16 %v337
    %v645 = vunpack.c.h.b16 %v337
    %v646 = vunpack.c.l.b16 %v338
    %v647 = vunpack.c.l.b16 %v339
    %v648 = vunpack.c.h.b16 %v339
    %v649 = vunpack.c.l.b16 %v340
    %v650 = vunpack.c.l.b16 %v341
    %v651 = vunpack.c.h.b16 %v341
    %v652 = vunpack.c.l.b16 %v342
    %v653 = vunpack.c.l.b16 %v343
    %v654 = vunpack.c.h.b16 %v343
    %v655 = vunpack.c.l.b16 %v344
    %v656 = vunpack.c.l.b16 %v345
    %v657 = vunpack.c.h.b16 %v345
    %v658 = vunpack.c.l.b16 %v346
    %v659 = vunpack.c.l.b16 %v347
    %v660 = vunpack.c.h.b16 %v347
    %v661 = vunpack.c.l.b16 %v348
    %v662 = vunpack.c.l.b16 %v349
    %v663 = vunpack.c.h.b16 %v349
    %v664 = vunpack.c.l.b16 %v350
    %v665 = vunpack.c.l.b16 %v351
    %v666 = vunpack.c.h.b16 %v351
    %v667 = vunpack.c.l.b16 %v352
    %v668 = vunpack.c.l.b16 %v353
    %v669 = vunpack.c.h.b16 %v353
    %v670 = vunpack.c.l.b16 %v354
    %v671 = vunpack.c.l.b16 %v355
    %v672 = vunpack.c.h.b16 %v355
    %v673 = vunpack.c.l.b16 %v356
    %v674 = vunpack.c.l.b16 %v357
    %v675 = vunpack.c.h.b16 %v357
    %v676 = vunpack.c.l.b16 %v358
    %v677 = vunpack.c.l.b16 %v359
    %v678 = vunpack.c.h.b16 %v359
    %v679 = vunpack.c.l.b16 %v360
    %v680 = vunpack.c.l.b16 %v361
    %v681 = vunpack.c.h.b16 %v361
    %v682 = vunpack.c.l.b16 %v362
    %v683 = vunpack.c.l.b16 %v363
    %v684 = vunpack.c.h.b16 %v363
    %v685 = vunpack.c.l.b16 %v364
    %v686 = vunpack.c.l.b16 %v365
    %v687 = vunpack.c.h.b16 %v365
    %v688 = vunpack.c.l.b16 %v366
    %v689 = vunpack.c.l.b16 %v367
    %v690 = vunpack.c.h.b16 %v367
    %v691 = vunpack.c.l.b16 %v368
    %v692 = vunpack.c.l.b16 %v369
    %v693 = vunpack.c.h.b16 %v369
    %v694 = vunpack.c.l.b16 %v370
    %v695 = vunpack.c.l.b16 %v371
    %v696 = vunpack.c.h.b16 %v371
    %v697 = vunpack.c.l.b16 %v372
    %v698 = vunpack.c.l.b16 %v373
    %v699 = vunpack.c.h.b16 %v373
    %v700 = vunpack.c.l.b16 %v374
    %v701 = vunpack.c.l.b16 %v375
    %v702 = vunpack.c.h.b16 %v375
    %v703 = vunpack.c.l.b16 %v376
    %v704 = vunpack.c.l.b16 %v377
    %v705 = vunpack.c.h.b16 %v377
    %v706 = vunpack.c.l.b16 %v378
    %v707 = vunpack.c.l.b16 %v379
    %v708 = vunpack.c.h.b16 %v379
    %v709 = vunpack.c.l.b16 %v380
    %v710 = vunpack.c.l.b16 %v381
    %v711 = vunpack.c.h.b16 %v381
    %v712 = vunpack.c.l.b16 %v382
    %v713 = vunpack.c.l.b16 %v383
    %v714 = vunpack.c.h.b16 %v383
    %v715 = vunpack.c.l.b16 %v384
    %v716 = vunpack.c.l.b16 %v385
    %v717 = vunpack.c.h.b16 %v385
    %v718 = vunpack.c.l.b16 %v386
    %v719 = vunpack.c.l.b16 %v387
    %v720 = vunpack.c.h.b16 %v387
    %v721 = vunpack.c.l.b16 %v388
    %v722 = vunpack.c.l.b16 %v389
    %v723 = vunpack.c.h.b16 %v389
    %v724 = vunpack.c.l.b16 %v390
    %v725 = vunpack.c.l.b16 %v391
    %v726 = vunpack.c.h.b16 %v391
    %v727 = vunpack.c.l.b16 %v392
    %v728 = vunpack.c.l.b16 %v393
    %v729 = vunpack.c.h.b16 %v393
    %v730 = vunpack.c.l.b16 %v394
    %v731 = vunpack.c.l.b16 %v395
    %v732 = vunpack.c.h.b16 %v395
    %v733 = vunpack.c.l.b16 %v396
    %v734 = vpack.c.b16 %v545, %v542
    %v735 = vpack.c.b16 %v546, %v543
    %v736 = vpack.c.b16 %v547, %v544
    %v737 = vpack.c.b16 %v551, %v548
    %v738 = vpack.c.b16 %v552, %v549
    %v739 = vpack.c.b16 %v553, %v550
    %v740 = vpack.c.b16 %v557, %v554
    %v741 = vpack.c.b16 %v558, %v555
    %v742 = vpack.c.b16 %v559, %v556
    %v743 = vpack.c.b16 %v563, %v560
    %v744 = vpack.c.b16 %v564, %v561
    %v745 = vpack.c.b16 %v565, %v562
    %v746 = vpack.c.b16 %v569, %v566
    %v747 = vpack.c.b16 %v570, %v567
    %v748 = vpack.c.b16 %v571, %v568
    %v749 = vpack.c.b16 %v575, %v572
    %v750 = vpack.c.b16 %v576, %v573
    %v751 = vpack.c.b16 %v577, %v574
    %v752 = vpack.c.b16 %v581, %v578
    %v753 = vpack.c.b16 %v582, %v579
    %v754 = vpack.c.b16 %v583, %v580
    %v755 = vpack.c.b16 %v587, %v584
    %v756 = vpack.c.b16 %v588, %v585
    %v757 = vpack.c.b16 %v589, %v586
    %v758 = vpack.c.b16 %v593, %v590
    %v759 = vpack.c.b16 %v594, %v591
    %v760 = vpack.c.b16 %v595, %v592
    %v761 = vpack.c.b16 %v599, %v596
    %v762 = vpack.c.b16 %v600, %v597
    %v763 = vpack.c.b16 %v601, %v598
    %v764 = vpack.c.b16 %v605, %v602
    %v765 = vpack.c.b16 %v606, %v603
    %v766 = vpack.c.b16 %v607, %v604
    %v767 = vpack.c.b16 %v611, %v608
    %v768 = vpack.c.b16 %v612, %v609
    %v769 = vpack.c.b16 %v613, %v610
    %v770 = vpack.c.b16 %v617, %v614
    %v771 = vpack.c.b16 %v618, %v615
    %v772 = vpack.c.b16 %v619, %v616
    %v773 = vpack.c.b16 %v623, %v620
    %v774 = vpack.c.b16 %v624, %v621
    %v775 = vpack.c.b16 %v625, %v622
    %v776 = vpack.c.b16 %v629, %v626
    %v777 = vpack.c.b16 %v630, %v627
    %v778 = vpack.c.b16 %v631, %v628
    %v779 = vpack.c.b16 %v635, %v632
    %v780 = vpack.c.b16 %v636, %v633
    %v781 = vpack.c.b16 %v637, %v634
    %v782 = vpack.c.b16 %v641, %v638
    %v783 = vpack.c.b16 %v642, %v639
    %v784 = vpack.c.b16 %v643, %v640
    %v785 = vpack.c.b16 %v647, %v644
    %v786 = vpack.c.b16 %v648, %v645
    %v787 = vpack.c.b16 %v649, %v646
    %v788 = vpack.c.b16 %v653, %v650
    %v789 = vpack.c.b16 %v654, %v651
    %v790 = vpack.c.b16 %v655, %v652
    %v791 = vpack.c.b16 %v659, %v656
    %v792 = vpack.c.b16 %v660, %v657
    %v793 = vpack.c.b16 %v661, %v658
    %v794 = vpack.c.b16 %v665, %v662
    %v795 = vpack.c.b16 %v666, %v663
    %v796 = vpack.c.b16 %v667, %v664
    %v797 = vpack.c.b16 %v671, %v668
    %v798 = vpack.c.b16 %v672, %v669
    %v799 = vpack.c.b16 %v673, %v670
    %v800 = vpack.c.b16 %v677, %v674
    %v801 = vpack.c.b16 %v678, %v675
    %v802 = vpack.c.b16 %v679, %v676
    %v803 = vpack.c.b16 %v683, %v680
    %v804 = vpack.c.b16 %v684, %v681
    %v805 = vpack.c.b16 %v685, %v682
    %v806 = vpack.c.b16 %v689, %v686
    %v807 = vpack.c.b16 %v690, %v687
    %v808 = vpack.c.b16 %v691, %v688
    %v809 = vpack.c.b16 %v695, %v692
    %v810 = vpack.c.b16 %v696, %v693
    %v811 = vpack.c.b16 %v697, %v694
    %v812 = vpack.c.b16 %v701, %v698
    %v813 = vpack.c.b16 %v702, %v699
    %v814 = vpack.c.b16 %v703, %v700
    %v815 = vpack.c.b16 %v707, %v704
    %v816 = vpack.c.b16 %v708, %v705
    %v817 = vpack.c.b16 %v709, %v706
    %v818 = vpack.c.b16 %v713, %v710
    %v819 = vpack.c.b16 %v714, %v711
    %v820 = vpack.c.b16 %v715, %v712
    %v821 = vpack.c.b16 %v719, %v716
    %v822 = vpack.c.b16 %v720, %v717
    %v823 = vpack.c.b16 %v721, %v718
    %v824 = vpack.c.b16 %v725, %v722
    %v825 = vpack.c.b16 %v726, %v723
    %v826 = vpack.c.b16 %v727, %v724
    %v827 = vpack.c.b16 %v731, %v728
    %v828 = vpack.c.b16 %v732, %v729
    %v829 = vpack.c.b16 %v733, %v730
    %926 = vmatprep.subr.bf16.mxu0 %v756
    %927 = vmatpush1.bf16.msra.mxu0 %v755
    %928 = vmatprep.subr.bf16.mxu0 %v753
    %929 = vmatpush1.bf16.msra.mxu0 %v752
    %930 = vmatprep.subr.bf16.mxu0 %v750
    %931 = vmatpush1.bf16.msra.mxu0 %v749
    %932 = vmatprep.subr.bf16.mxu0 %v747
    %933 = vmatpush1.bf16.msra.mxu0 %v746
    %934 = vmatprep.subr.bf16.mxu0 %v744
    %935 = vmatpush1.bf16.msra.mxu0 %v743
    %936 = vmatprep.subr.bf16.mxu0 %v741
    %937 = vmatpush1.bf16.msra.mxu0 %v740
    %938 = vmatprep.subr.bf16.mxu0 %v738
    %939 = vmatpush1.bf16.msra.mxu0 %v737
    %940 = vmatprep.subr.bf16.mxu0 %v735
    %941 = vmatpush1.bf16.msra.mxu0 %v734
    %942 = vmatprep.subr.bf16.mxu0 %v780
    %943 = vmatpush2.bf16.msra.mxu0 %v779
    %944 = vmatprep.subr.bf16.mxu0 %v777
    %945 = vmatpush2.bf16.msra.mxu0 %v776
    %946 = vmatprep.subr.bf16.mxu0 %v774
    %947 = vmatpush2.bf16.msra.mxu0 %v773
    %948 = vmatprep.subr.bf16.mxu0 %v771
    %949 = vmatpush2.bf16.msra.mxu0 %v770
    %950 = vmatprep.subr.bf16.mxu0 %v768
    %951 = vmatpush2.bf16.msra.mxu0 %v767
    %952 = vmatprep.subr.bf16.mxu0 %v765
    %953 = vmatpush2.bf16.msra.mxu0 %v764
    %954 = vmatprep.subr.bf16.mxu0 %v762
    %955 = vmatpush2.bf16.msra.mxu0 %v761
    %956 = vmatprep.subr.bf16.mxu0 %v759
    %957 = vmatpush2.bf16.msra.mxu0 %v758
    %958 = vmatprep.mubr.bf16.mxu0 %v266
    %959 = vmatmul.mubr.bf16.gmra.mxu0 %v265
    %v960 = vpop.f32.mrf.mxu0
    %v961 = vadd.f32 %v402, %v960
    %v962 = vpop.f32.mrf.mxu0
    %v963 = vadd.f32 %v406, %v962
    %v964 = vpop.f32.mrf.mxu0
    %v965 = vadd.f32 %v402, %v964
    %v966 = vpop.f32.mrf.mxu0
    %v967 = vadd.f32 %v406, %v966
    %968 = vdwg.mxu0
    %969 = vmatprep.subr.bf16.mxu0 %v804
    %970 = vmatpush1.bf16.msra.mxu0 %v803
    %971 = vmatprep.subr.bf16.mxu0 %v801
    %972 = vmatpush1.bf16.msra.mxu0 %v800
    %973 = vmatprep.subr.bf16.mxu0 %v798
    %974 = vmatpush1.bf16.msra.mxu0 %v797
    %975 = vmatprep.subr.bf16.mxu0 %v795
    %976 = vmatpush1.bf16.msra.mxu0 %v794
    %977 = vmatprep.subr.bf16.mxu0 %v792
    %978 = vmatpush1.bf16.msra.mxu0 %v791
    %979 = vmatprep.subr.bf16.mxu0 %v789
    %980 = vmatpush1.bf16.msra.mxu0 %v788
    %981 = vmatprep.subr.bf16.mxu0 %v786
    %982 = vmatpush1.bf16.msra.mxu0 %v785
    %983 = vmatprep.subr.bf16.mxu0 %v783
    %984 = vmatpush1.bf16.msra.mxu0 %v782
    %985 = vmatprep.subr.bf16.mxu0 %v828
    %986 = vmatpush2.bf16.msra.mxu0 %v827
    %987 = vmatprep.subr.bf16.mxu0 %v825
    %988 = vmatpush2.bf16.msra.mxu0 %v824
    %989 = vmatprep.subr.bf16.mxu0 %v822
    %990 = vmatpush2.bf16.msra.mxu0 %v821
    %991 = vmatprep.subr.bf16.mxu0 %v819
    %992 = vmatpush2.bf16.msra.mxu0 %v818
    %993 = vmatprep.subr.bf16.mxu0 %v816
    %994 = vmatpush2.bf16.msra.mxu0 %v815
    %995 = vmatprep.subr.bf16.mxu0 %v813
    %996 = vmatpush2.bf16.msra.mxu0 %v812
    %997 = vmatprep.subr.bf16.mxu0 %v810
    %998 = vmatpush2.bf16.msra.mxu0 %v809
    %999 = vmatprep.subr.bf16.mxu0 %v807
    %1000 = vmatpush2.bf16.msra.mxu0 %v806
    %1001 = vmatprep.mubr.bf16.mxu0 %v268
    %1002 = vmatmul.mubr.bf16.gmra.mxu0 %v267
    %v1003 = vpop.f32.mrf.mxu0
    %v1004 = vadd.f32 %v961, %v1003
    %v1005 = vpop.f32.mrf.mxu0
    %v1006 = vadd.f32 %v963, %v1005
    %v1007 = vpop.f32.mrf.mxu0
    %v1008 = vadd.f32 %v965, %v1007
    %v1009 = vpop.f32.mrf.mxu0
    %v1010 = vadd.f32 %v967, %v1009
    %1011 = vdwg.mxu0
    %1012 = vmatprep.subr.bf16.mxu0 0
    %1013 = vmatpush1.bf16.msra.mxu0 %v757
    %1014 = vmatprep.subr.bf16.mxu0 0
    %1015 = vmatpush1.bf16.msra.mxu0 %v754
    %1016 = vmatprep.subr.bf16.mxu0 0
    %1017 = vmatpush1.bf16.msra.mxu0 %v751
    %1018 = vmatprep.subr.bf16.mxu0 0
    %1019 = vmatpush1.bf16.msra.mxu0 %v748
    %1020 = vmatprep.subr.bf16.mxu0 0
    %1021 = vmatpush1.bf16.msra.mxu0 %v745
    %1022 = vmatprep.subr.bf16.mxu0 0
    %1023 = vmatpush1.bf16.msra.mxu0 %v742
    %1024 = vmatprep.subr.bf16.mxu0 0
    %1025 = vmatpush1.bf16.msra.mxu0 %v739
    %1026 = vmatprep.subr.bf16.mxu0 0
    %1027 = vmatpush1.bf16.msra.mxu0 %v736
    %1028 = vmatprep.subr.bf16.mxu0 0
    %1029 = vmatpush2.bf16.msra.mxu0 %v781
    %1030 = vmatprep.subr.bf16.mxu0 0
    %1031 = vmatpush2.bf16.msra.mxu0 %v778
    %1032 = vmatprep.subr.bf16.mxu0 0
    %1033 = vmatpush2.bf16.msra.mxu0 %v775
    %1034 = vmatprep.subr.bf16.mxu0 0
    %1035 = vmatpush2.bf16.msra.mxu0 %v772
    %1036 = vmatprep.subr.bf16.mxu0 0
    %1037 = vmatpush2.bf16.msra.mxu0 %v769
    %1038 = vmatprep.subr.bf16.mxu0 0
    %1039 = vmatpush2.bf16.msra.mxu0 %v766
    %1040 = vmatprep.subr.bf16.mxu0 0
    %1041 = vmatpush2.bf16.msra.mxu0 %v763
    %1042 = vmatprep.subr.bf16.mxu0 0
    %1043 = vmatpush2.bf16.msra.mxu0 %v760
    %1044 = vmatprep.mubr.bf16.mxu0 %v266
    %1045 = vmatmul.mubr.bf16.gmra.mxu0 %v265
    %v1046 = vpop.f32.mrf.mxu0
    %v1047 = vadd.f32 %v410, %v1046
    %v1048 = vpop.f32.mrf.mxu0
    %v1049 = vpop.f32.mrf.mxu0
    %v1050 = vadd.f32 %v410, %v1049
    %v1051 = vpop.f32.mrf.mxu0
    %1052 = vdwg.mxu0
    %1053 = vmatprep.subr.bf16.mxu0 0
    %1054 = vmatpush1.bf16.msra.mxu0 %v805
    %1055 = vmatprep.subr.bf16.mxu0 0
    %1056 = vmatpush1.bf16.msra.mxu0 %v802
    %1057 = vmatprep.subr.bf16.mxu0 0
    %1058 = vmatpush1.bf16.msra.mxu0 %v799
    %1059 = vmatprep.subr.bf16.mxu0 0
    %1060 = vmatpush1.bf16.msra.mxu0 %v796
    %1061 = vmatprep.subr.bf16.mxu0 0
    %1062 = vmatpush1.bf16.msra.mxu0 %v793
    %1063 = vmatprep.subr.bf16.mxu0 0
    %1064 = vmatpush1.bf16.msra.mxu0 %v790
    %1065 = vmatprep.subr.bf16.mxu0 0
    %1066 = vmatpush1.bf16.msra.mxu0 %v787
    %1067 = vmatprep.subr.bf16.mxu0 0
    %1068 = vmatpush1.bf16.msra.mxu0 %v784
    %1069 = vmatprep.subr.bf16.mxu0 0
    %1070 = vmatpush2.bf16.msra.mxu0 %v829
    %1071 = vmatprep.subr.bf16.mxu0 0
    %1072 = vmatpush2.bf16.msra.mxu0 %v826
    %1073 = vmatprep.subr.bf16.mxu0 0
    %1074 = vmatpush2.bf16.msra.mxu0 %v823
    %1075 = vmatprep.subr.bf16.mxu0 0
    %1076 = vmatpush2.bf16.msra.mxu0 %v820
    %1077 = vmatprep.subr.bf16.mxu0 0
    %1078 = vmatpush2.bf16.msra.mxu0 %v817
    %1079 = vmatprep.subr.bf16.mxu0 0
    %1080 = vmatpush2.bf16.msra.mxu0 %v814
    %1081 = vmatprep.subr.bf16.mxu0 0
    %1082 = vmatpush2.bf16.msra.mxu0 %v811
    %1083 = vmatprep.subr.bf16.mxu0 0
    %1084 = vmatpush2.bf16.msra.mxu0 %v808
    %1085 = vmatprep.mubr.bf16.mxu0 %v268
    %1086 = vmatmul.mubr.bf16.gmra.mxu0 %v267
    %v1087 = vpop.f32.mrf.mxu0
    %v1088 = vadd.f32 %v1047, %v1087
    %v1089 = vpop.f32.mrf.mxu0
    %v1090 = vpop.f32.mrf.mxu0
    %v1091 = vadd.f32 %v1050, %v1090
    %v1092 = vpop.f32.mrf.mxu0
    %1093 = vdwg.mxu0
    %v1094 = vmax.f32 %v1004, 0.0
    %v1095 = vmax.f32 %v1006, 0.0
    %v1096 = vmax.f32 %v1088, 0.0
    %v1097 = vmax.f32 %v1008, 0.0
    %v1098 = vmax.f32 %v1010, 0.0
    %v1099 = vmax.f32 %v1091, 0.0
    %v1100 = vpack.c.bf16 %v1097, %v1094
    %v1101 = vpack.c.bf16 %v1098, %v1095
    %v1102 = vpack.c.bf16 %v1099, %v1096
    %v1103 = vld [vmem:[#allocation10] sm:$0xf]
    %v1104 = vld [vmem:[#allocation10 + $0x4] sm:$0xf]
    %v1105 = vld [vmem:[#allocation10 + $0x8] sm:$0xf]
    %v1106 = vld [vmem:[#allocation10 + $0xc] sm:$0xf]
    %v1107 = vld [vmem:[#allocation10 + $0x10] sm:$0xf]
    %v1108 = vld [vmem:[#allocation10 + $0x14] sm:$0xf]
    %v1109 = vld [vmem:[#allocation10 + $0x18] sm:$0xf]
    %v1110 = vld [vmem:[#allocation10 + $0x1c] sm:$0xf]
    %v1111 = vld [vmem:[#allocation10 + $0x20] sm:$0xf]
    %v1112 = vld [vmem:[#allocation10 + $0x24] sm:$0xf]
    %v1113 = vld [vmem:[#allocation10 + $0x28] sm:$0xf]
    %v1114 = vld [vmem:[#allocation10 + $0x2c] sm:$0xf]
    %v1115 = vld [vmem:[#allocation10 + $0x30] sm:$0xf]
    %v1116 = vld [vmem:[#allocation10 + $0x34] sm:$0xf]
    %v1117 = vld [vmem:[#allocation10 + $0x38] sm:$0xf]
    %v1118 = vld [vmem:[#allocation10 + $0x3c] sm:$0xf]
    %v1119 = vld [vmem:[#allocation10 + $0x40] sm:$0xf]
    %v1120 = vld [vmem:[#allocation10 + $0x44] sm:$0xf]
    %v1121 = vld [vmem:[#allocation10 + $0x48] sm:$0xf]
    %v1122 = vld [vmem:[#allocation10 + $0x4c] sm:$0xf]
    %v1123 = vld [vmem:[#allocation10 + $0x50] sm:$0xf]
    %v1124 = vld [vmem:[#allocation10 + $0x54] sm:$0xf]
    %v1125 = vld [vmem:[#allocation10 + $0x58] sm:$0xf]
    %v1126 = vld [vmem:[#allocation10 + $0x5c] sm:$0xf]
    %v1127 = vld [vmem:[#allocation10 + $0x60] sm:$0xf]
    %v1128 = vld [vmem:[#allocation10 + $0x64] sm:$0xf]
    %v1129 = vld [vmem:[#allocation10 + $0x68] sm:$0xf]
    %v1130 = vld [vmem:[#allocation10 + $0x6c] sm:$0xf]
    %v1131 = vld [vmem:[#allocation10 + $0x70] sm:$0xf]
    %v1132 = vld [vmem:[#allocation10 + $0x74] sm:$0xf]
    %v1133 = vld [vmem:[#allocation10 + $0x78] sm:$0xf]
    %v1134 = vld [vmem:[#allocation10 + $0x7c] sm:$0xf]
    %v1135 = vld [vmem:[#allocation10 + $0x80] sm:$0xf]
    %v1136 = vld [vmem:[#allocation10 + $0x84] sm:$0xf]
    %v1137 = vld [vmem:[#allocation10 + $0x88] sm:$0xf]
    %v1138 = vld [vmem:[#allocation10 + $0x8c] sm:$0xf]
    %v1139 = vld [vmem:[#allocation10 + $0x90] sm:$0xf]
    %v1140 = vld [vmem:[#allocation10 + $0x94] sm:$0xf]
    %v1141 = vld [vmem:[#allocation10 + $0x98] sm:$0xf]
    %v1142 = vld [vmem:[#allocation10 + $0x9c] sm:$0xf]
    %v1143 = vld [vmem:[#allocation10 + $0xa0] sm:$0xf]
    %v1144 = vld [vmem:[#allocation10 + $0xa4] sm:$0xf]
    %v1145 = vld [vmem:[#allocation10 + $0xa8] sm:$0xf]
    %v1146 = vld [vmem:[#allocation10 + $0xac] sm:$0xf]
    %v1147 = vld [vmem:[#allocation10 + $0xb0] sm:$0xf]
    %v1148 = vld [vmem:[#allocation10 + $0xb4] sm:$0xf]
    %v1149 = vld [vmem:[#allocation10 + $0xb8] sm:$0xf]
    %v1150 = vld [vmem:[#allocation10 + $0xbc] sm:$0xf]
    %v1151 = vld [vmem:[%s6] sm:$0x1]
    %v1153 = vlaneseq
    %v1154 = vshrl.u32 %v1153, 7
    %v1155 = vsub.s32 0, %v1154
    %v1156 = vrot.slane %v1151, %v1155
    %v1206 = vunpack.c.l.b16 %v1103
    %v1207 = vunpack.c.l.b16 %v1104
    %v1208 = vunpack.c.l.b16 %v1105
    %v1209 = vunpack.c.l.b16 %v1106
    %v1210 = vunpack.c.l.b16 %v1107
    %v1211 = vunpack.c.l.b16 %v1108
    %v1212 = vunpack.c.l.b16 %v1109
    %v1213 = vunpack.c.l.b16 %v1110
    %v1214 = vunpack.c.l.b16 %v1111
    %v1215 = vunpack.c.l.b16 %v1112
    %v1216 = vunpack.c.l.b16 %v1113
    %v1217 = vunpack.c.l.b16 %v1114
    %v1218 = vunpack.c.l.b16 %v1115
    %v1219 = vunpack.c.l.b16 %v1116
    %v1220 = vunpack.c.l.b16 %v1117
    %v1221 = vunpack.c.l.b16 %v1118
    %v1222 = vunpack.c.l.b16 %v1119
    %v1223 = vunpack.c.l.b16 %v1120
    %v1224 = vunpack.c.l.b16 %v1121
    %v1225 = vunpack.c.l.b16 %v1122
    %v1226 = vunpack.c.l.b16 %v1123
    %v1227 = vunpack.c.l.b16 %v1124
    %v1228 = vunpack.c.l.b16 %v1125
    %v1229 = vunpack.c.l.b16 %v1126
    %v1230 = vunpack.c.l.b16 %v1127
    %v1231 = vunpack.c.l.b16 %v1128
    %v1232 = vunpack.c.l.b16 %v1129
    %v1233 = vunpack.c.l.b16 %v1130
    %v1234 = vunpack.c.l.b16 %v1131
    %v1235 = vunpack.c.l.b16 %v1132
    %v1236 = vunpack.c.l.b16 %v1133
    %v1237 = vunpack.c.l.b16 %v1134
    %v1238 = vunpack.c.l.b16 %v1135
    %v1239 = vunpack.c.l.b16 %v1136
    %v1240 = vunpack.c.l.b16 %v1137
    %v1241 = vunpack.c.l.b16 %v1138
    %v1242 = vunpack.c.l.b16 %v1139
    %v1243 = vunpack.c.l.b16 %v1140
    %v1244 = vunpack.c.l.b16 %v1141
    %v1245 = vunpack.c.l.b16 %v1142
    %v1246 = vunpack.c.l.b16 %v1143
    %v1247 = vunpack.c.l.b16 %v1144
    %v1248 = vunpack.c.l.b16 %v1145
    %v1249 = vunpack.c.l.b16 %v1146
    %v1250 = vunpack.c.l.b16 %v1147
    %v1251 = vunpack.c.l.b16 %v1148
    %v1252 = vunpack.c.l.b16 %v1149
    %v1253 = vunpack.c.l.b16 %v1150
    %v1254 = vpack.c.b16 %v1207, %v1206
    %v1255 = vpack.c.b16 %v1209, %v1208
    %v1256 = vpack.c.b16 %v1211, %v1210
    %v1257 = vpack.c.b16 %v1213, %v1212
    %v1258 = vpack.c.b16 %v1215, %v1214
    %v1259 = vpack.c.b16 %v1217, %v1216
    %v1260 = vpack.c.b16 %v1219, %v1218
    %v1261 = vpack.c.b16 %v1221, %v1220
    %v1262 = vpack.c.b16 %v1223, %v1222
    %v1263 = vpack.c.b16 %v1225, %v1224
    %v1264 = vpack.c.b16 %v1227, %v1226
    %v1265 = vpack.c.b16 %v1229, %v1228
    %v1266 = vpack.c.b16 %v1231, %v1230
    %v1267 = vpack.c.b16 %v1233, %v1232
    %v1268 = vpack.c.b16 %v1235, %v1234
    %v1269 = vpack.c.b16 %v1237, %v1236
    %v1270 = vpack.c.b16 %v1239, %v1238
    %v1271 = vpack.c.b16 %v1241, %v1240
    %v1272 = vpack.c.b16 %v1243, %v1242
    %v1273 = vpack.c.b16 %v1245, %v1244
    %v1274 = vpack.c.b16 %v1247, %v1246
    %v1275 = vpack.c.b16 %v1249, %v1248
    %v1276 = vpack.c.b16 %v1251, %v1250
    %v1277 = vpack.c.b16 %v1253, %v1252
    %1302 = vmatprep.subr.bf16.mxu0 0
    %1303 = vmatpush1.bf16.msra.mxu0 %v1261
    %1304 = vmatprep.subr.bf16.mxu0 0
    %1305 = vmatpush1.bf16.msra.mxu0 %v1260
    %1306 = vmatprep.subr.bf16.mxu0 0
    %1307 = vmatpush1.bf16.msra.mxu0 %v1259
    %1308 = vmatprep.subr.bf16.mxu0 0
    %1309 = vmatpush1.bf16.msra.mxu0 %v1258
    %1310 = vmatprep.subr.bf16.mxu0 0
    %1311 = vmatpush1.bf16.msra.mxu0 %v1257
    %1312 = vmatprep.subr.bf16.mxu0 0
    %1313 = vmatpush1.bf16.msra.mxu0 %v1256
    %1314 = vmatprep.subr.bf16.mxu0 0
    %1315 = vmatpush1.bf16.msra.mxu0 %v1255
    %1316 = vmatprep.subr.bf16.mxu0 0
    %1317 = vmatpush1.bf16.msra.mxu0 %v1254
    %1318 = vmatprep.subr.bf16.mxu0 0
    %1319 = vmatpush2.bf16.msra.mxu0 %v1269
    %1320 = vmatprep.subr.bf16.mxu0 0
    %1321 = vmatpush2.bf16.msra.mxu0 %v1268
    %1322 = vmatprep.subr.bf16.mxu0 0
    %1323 = vmatpush2.bf16.msra.mxu0 %v1267
    %1324 = vmatprep.subr.bf16.mxu0 0
    %1325 = vmatpush2.bf16.msra.mxu0 %v1266
    %1326 = vmatprep.subr.bf16.mxu0 0
    %1327 = vmatpush2.bf16.msra.mxu0 %v1265
    %1328 = vmatprep.subr.bf16.mxu0 0
    %1329 = vmatpush2.bf16.msra.mxu0 %v1264
    %1330 = vmatprep.subr.bf16.mxu0 0
    %1331 = vmatpush2.bf16.msra.mxu0 %v1263
    %1332 = vmatprep.subr.bf16.mxu0 0
    %1333 = vmatpush2.bf16.msra.mxu0 %v1262
    %1334 = vmatprep.mubr.bf16.mxu0 %v1101
    %1335 = vmatmul.mubr.bf16.gmra.mxu0 %v1100
    %v1336 = vpop.f32.mrf.mxu0
    %v1337 = vadd.f32 %v1156, %v1336
    %v1338 = vpop.f32.mrf.mxu0
    %v1339 = vpop.f32.mrf.mxu0
    %v1340 = vadd.f32 %v1156, %v1339
    %v1341 = vpop.f32.mrf.mxu0
    %1342 = vdwg.mxu0
    %1343 = vmatprep.subr.bf16.mxu0 0
    %1344 = vmatpush1.bf16.msra.mxu0 %v1277
    %1345 = vmatprep.subr.bf16.mxu0 0
    %1346 = vmatpush1.bf16.msra.mxu0 %v1276
    %1347 = vmatprep.subr.bf16.mxu0 0
    %1348 = vmatpush1.bf16.msra.mxu0 %v1275
    %1349 = vmatprep.subr.bf16.mxu0 0
    %1350 = vmatpush1.bf16.msra.mxu0 %v1274
    %1351 = vmatprep.subr.bf16.mxu0 0
    %1352 = vmatpush1.bf16.msra.mxu0 %v1273
    %1353 = vmatprep.subr.bf16.mxu0 0
    %1354 = vmatpush1.bf16.msra.mxu0 %v1272
    %1355 = vmatprep.subr.bf16.mxu0 0
    %1356 = vmatpush1.bf16.msra.mxu0 %v1271
    %1357 = vmatprep.subr.bf16.mxu0 0
    %1358 = vmatpush1.bf16.msra.mxu0 %v1270
    %1359 = vmatprep.subr.bf16.mxu0 0
    %1360 = vmatpush2.bf16.msra.mxu0 0
    %1361 = vmatprep.subr.bf16.mxu0 0
    %1362 = vmatpush2.bf16.msra.mxu0 0
    %1363 = vmatprep.subr.bf16.mxu0 0
    %1364 = vmatpush2.bf16.msra.mxu0 0
    %1365 = vmatprep.subr.bf16.mxu0 0
    %1366 = vmatpush2.bf16.msra.mxu0 0
    %1367 = vmatprep.subr.bf16.mxu0 0
    %1368 = vmatpush2.bf16.msra.mxu0 0
    %1369 = vmatprep.subr.bf16.mxu0 0
    %1370 = vmatpush2.bf16.msra.mxu0 0
    %1371 = vmatprep.subr.bf16.mxu0 0
    %1372 = vmatpush2.bf16.msra.mxu0 0
    %1373 = vmatprep.subr.bf16.mxu0 0
    %1374 = vmatpush2.bf16.msra.mxu0 0
    %1375 = vmatprep.mubr.bf16.mxu0 0
    %1376 = vmatmul.mubr.bf16.gmra.mxu0 %v1102
    %v1377 = vpop.f32.mrf.mxu0
    %v1378 = vadd.f32 %v1337, %v1377
    %v1379 = vpop.f32.mrf.mxu0
    %v1380 = vpop.f32.mrf.mxu0
    %v1381 = vadd.f32 %v1340, %v1380
    %v1382 = vpop.f32.mrf.mxu0
    %1383 = vdwg.mxu0
    %1384 = vst [vmem:[#allocation11] sm:$0xff] %v1378
    %1385 = vst [vmem:[#allocation11 + $0x8] sm:$0xff] %v1381
    // Predicated region
    $region50: #{tpu_custom_call.1} parent=1 // pred_check
      _
    $region51: #{tpu_custom_call.1} parent=1 // pred_check_branch
      %1387 = sbr.rel (0) target = $region53
    $region52: #{tpu_custom_call.1} parent=1 // pred_region
      %s1389 = ssub.s32 256, 256
      %1390 = vsyncadd [#allocation4], %s1389
      %s1391 = sshll.u32 [#allocation11], 4
      %s1392 = int_to_ptr.vmem [resolvable:$true] %s1391
      %1397 = dma.vmem_to_hbm [thread:$0]  %s1392, 256, %s7, [#allocation4], 128, 128, 8
    $region53: #{tpu_custom_call.1} parent=1 // pred_fallthru
      _
    // Predicated region
    $region54: #{tpu_custom_call.1} parent=1 // pred_check
      _
    $region55: #{tpu_custom_call.1} parent=1 // pred_check_branch
      %1399 = sbr.rel (0) target = $region57
    $region56: #{tpu_custom_call.1} parent=1 // pred_region
      %1400 = dma.done [#allocation4], 256
    $region57: #{tpu_custom_call.1} parent=1 // pred_fallthru
      _
    %1401 = vsyncpa [#allocation3], 1
    %1402 = vsyncpa [#allocation6], 1
    %1403 = vsyncpa [#allocation9], 1
    %1404 = vsyncpa [#allocation4], 1

</llo_original>
